<compile_context>
chip_gen: v7x
topology: tpu7x:2x2x1
jax: 0.10.0
libtpu: 0.0.40
codegen_flags: <defaults>
</compile_context>

<pallas_src>
import jax
import jax.numpy as jnp
from jax import lax
from jax.experimental import pallas as pl
from jax.experimental.pallas import tpu as pltpu


def _eca_kernel(w_ref, x_ref, o_ref):
    # w_ref: (k,) float32 in SMEM   (Conv1d(1, 1, k, bias=False) weight)
    # x_ref: (TB, C, HW) in VMEM
    # o_ref: (TB, C, HW) in VMEM
    x = x_ref[...]
    tb, C, hw = x.shape
    k = w_ref.shape[0]
    pad = (k - 1) // 2

    # Global average pool over the spatial dim; channel axis stays on sublanes,
    # so the conv / sigmoid / broadcast-multiply need no lane<->sublane relayout.
    y = jnp.sum(x.astype(jnp.float32), axis=2, keepdims=True) * (1.0 / hw)  # (TB,C,1)

    # Conv1d along channels (PyTorch cross-correlation, zero padding, no bias),
    # built from NON-NEGATIVE sublane rolls + edge masks (k is static).
    idx = lax.broadcasted_iota(jnp.int32, (tb, C, 1), 1)
    y_conv = jnp.zeros_like(y)
    for t in range(k):                       # Python unroll
        off = t - pad                        # out[c] += w[t] * y[c + off]
        shift = (-off) % C                   # non-negative circular shift
        shifted = pltpu.roll(y, shift=shift, axis=1) if shift else y
        valid = (idx + off >= 0) & (idx + off <= C - 1)
        y_conv = y_conv + w_ref[t] * jnp.where(valid, shifted, 0.0)

    gate = jax.nn.sigmoid(y_conv)            # (TB, C, 1) float32
    # Broadcast over HW is sublane-aligned; multiply in x.dtype (HBM-bound anyway).
    o_ref[...] = (x * gate.astype(x.dtype)).astype(o_ref.dtype)


def _largest_divisor_leq(n: int, m: int) -> int:
    """Largest d such that d divides n and d <= m (n, m >= 1)."""
    d = max(1, min(n, m))
    while n % d:
        d -= 1
    return d


def eca_forward(x, weight, *, block_bytes_budget=8 * 1024 * 1024):
    """ECA forward. x: (B, C, H, W); weight: Conv1d weight of shape (k,), (1, k)
    or (1, 1, k). Returns (B, C, H, W) in x.dtype."""
    b, c, h, w = x.shape
    hw = h * w
    weight = jnp.asarray(weight, jnp.float32).reshape(-1)

    # No HW padding: block last two dims equal the full array dims, so the
    # (8,128) divisibility rule does not apply and no extra HBM passes occur.
    xr = x.reshape(b, c, hw)

    itemsize = jnp.dtype(x.dtype).itemsize
    bytes_per_batch = c * hw * itemsize

    # ---- pick TB (batch rows per grid step) --------------------------------
    tb = int(max(1, min(b, block_bytes_budget // max(1, bytes_per_batch))))
    if b >= 2:
        # Keep at least 2 grid steps so both TensorCores on v7x get work.
        tb = min(tb, pl.cdiv(b, 2))
    tb_div = _largest_divisor_leq(b, tb)
    if 2 * tb_div >= tb:
        tb = tb_div                  # prefer TB | B: tail block never pools OOB rows
    grid = (pl.cdiv(b, tb),)

    # ---- VMEM budget (generation-aware) ------------------------------------
    # in + out double-buffered = 4x block; bf16 inputs may materialize an f32
    # pooling temp of the block (+2x) -> 7x; f32 inputs -> 5x; 32 MiB floor.
    mult = 5 if itemsize >= 4 else 7
    try:
        phys_vmem = int(pltpu.get_tpu_info().vmem_capacity_bytes)
    except Exception:
        phys_vmem = 64 * 2**20       # conservative fallback (v7x per-core VMEM)
    vmem_cap = max(32 * 2**20, phys_vmem - 24 * 2**20)   # leave compiler headroom
    vmem_limit = int(min(vmem_cap, max(32 * 2**20, mult * tb * bytes_per_batch)))
    # TODO(synk): if a single batch row (mult * bytes_per_batch) exceeds vmem_cap
    # (early-layer feature maps on v7x's 64 MiB VMEM), split into an HW-tiled
    # pooling pass producing the (B, C) gate plus an HW-tiled scale pass.

    cost = pl.CostEstimate(
        flops=3 * b * c * hw,            # pool adds + gate multiply (conv is O(B*C))
        transcendentals=b * c,           # sigmoid
        bytes_accessed=2 * b * c * hw * itemsize,
    )

    out = pl.pallas_call(
        _eca_kernel,
        out_shape=jax.ShapeDtypeStruct((b, c, hw), x.dtype),
        grid_spec=pltpu.PrefetchScalarGridSpec(
            num_scalar_prefetch=0,
            grid=grid,
            in_specs=[
                pl.BlockSpec(memory_space=pltpu.MemorySpace.SMEM),  # conv weight (k,)
                pl.BlockSpec((tb, c, hw), lambda i: (i, 0, 0)),     # x tile
            ],
            out_specs=pl.BlockSpec((tb, c, hw), lambda i: (i, 0, 0)),
        ),
        compiler_params=pltpu.CompilerParams(
            dimension_semantics=("parallel",),
            vmem_limit_bytes=vmem_limit,
        ),
        cost_estimate=cost,
        # NOTE: input_output_aliases={1: 0} would also save the output HBM
        # allocation when callers donate x; left off here because the demo
        # reuses x after the call.
    )(weight, xr)

    return out.reshape(b, c, h, w)


def eca_ref(x, weight):
    """Pure-JAX reference matching the PyTorch eca_layer forward."""
    weight = jnp.asarray(weight, jnp.float32).reshape(-1)
    k = weight.shape[0]
    pad = (k - 1) // 2
    y = jnp.mean(x.astype(jnp.float32), axis=(2, 3))            # (B, C)
    y_pad = jnp.pad(y, ((0, 0), (pad, pad)))
    c = y.shape[1]
    y_conv = sum(weight[t] * y_pad[:, t:t + c] for t in range(k))
    gate = jax.nn.sigmoid(y_conv)
    return x * gate[:, :, None, None].astype(x.dtype)


if __name__ == "__main__":
    key = jax.random.PRNGKey(0)
    kx, kw = jax.random.split(key)

    B, C, H, W = 2, 4, 16, 16
    k_size = 3

    x = jax.random.normal(kx, (B, C, H, W), dtype=jnp.float32)
    # Conv1d(1, 1, k_size, bias=False) weight, PyTorch-default-style init.
    bound = 1.0 / jnp.sqrt(jnp.float32(k_size))
    weight = jax.random.uniform(kw, (k_size,), dtype=jnp.float32,
                                minval=-bound, maxval=bound)

    out = eca_forward(x, weight)
    jax.block_until_ready(out)

    ref = eca_ref(x, weight)
    assert out.shape == (B, C, H, W)
    assert jnp.allclose(out, ref, atol=1e-5, rtol=1e-5), "mismatch vs reference"

    print("KERNEL_OK")
</pallas_src>

<mosaic_0001>
module attributes {stable_mosaic.version = 11 : i64} {
  func.func @_eca_kernel(%arg0: i32, %arg1: memref<3xf32, #tpu.memory_space<smem>>, %arg2: memref<1x4x256xf32, #tpu.memory_space<vmem>>, %arg3: memref<1x4x256xf32, #tpu.memory_space<vmem>>) attributes {dimension_semantics = [#tpu.dimension_semantics<parallel>], iteration_bounds = array<i64: 2>, scalar_prefetch = 0 : i64, scratch_operands = 0 : i64, tpu.core_type = #tpu.core_type<tc>, window_params = [{transform_indices = @transform_0, window_bounds = array<i64: 3>}, {transform_indices = @transform_1, window_bounds = array<i64: 1, 4, 256>}, {transform_indices = @transform_2, window_bounds = array<i64: 1, 4, 256>}]} {
    %c0 = arith.constant 0 : index
    %c0_0 = arith.constant 0 : index
    %c0_1 = arith.constant 0 : index
    %0 = vector.load %arg2[%c0, %c0_0, %c0_1] : memref<1x4x256xf32, #tpu.memory_space<vmem>>, vector<1x4x256xf32>
    %cst = arith.constant dense<0.000000e+00> : vector<1x4xf32>
    %1 = vector.multi_reduction <add>, %0, %cst [2] : vector<1x4x256xf32> to vector<1x4xf32>
    %2 = vector.shape_cast %1 : vector<1x4xf32> to vector<1x4x1xf32>
    %cst_2 = arith.constant 3.906250e-03 : f32
    %3 = vector.broadcast %cst_2 : f32 to vector<1x4x1xf32>
    %4 = arith.mulf %2, %3 : vector<1x4x1xf32>
    %5 = tpu.iota {dimensions = array<i32: 1>} : vector<1x4x1xi32>
    %cst_3 = arith.constant 0.000000e+00 : f32
    %6 = vector.broadcast %cst_3 : f32 to vector<1x4x1xf32>
    %c1_i32 = arith.constant 1 : i32
    %7 = tpu.dynamic_rotate %4 by %c1_i32 dim 1 : vector<1x4x1xf32>, i32 -> vector<1x4x1xf32>
    %c-1_i32 = arith.constant -1 : i32
    %8 = vector.broadcast %c-1_i32 : i32 to vector<1x4x1xi32>
    %9 = arith.addi %5, %8 : vector<1x4x1xi32>
    %c0_i32 = arith.constant 0 : i32
    %10 = vector.broadcast %c0_i32 : i32 to vector<1x4x1xi32>
    %11 = arith.cmpi sge, %9, %10 : vector<1x4x1xi32>
    %c-1_i32_4 = arith.constant -1 : i32
    %12 = vector.broadcast %c-1_i32_4 : i32 to vector<1x4x1xi32>
    %13 = arith.addi %5, %12 : vector<1x4x1xi32>
    %c3_i32 = arith.constant 3 : i32
    %14 = vector.broadcast %c3_i32 : i32 to vector<1x4x1xi32>
    %15 = arith.cmpi sle, %13, %14 : vector<1x4x1xi32>
    %16 = arith.andi %11, %15 : vector<1x4x1xi1>
    %c0_5 = arith.constant 0 : index
    %17 = memref.load %arg1[%c0_5] : memref<3xf32, #tpu.memory_space<smem>>
    %cst_6 = arith.constant 0.000000e+00 : f32
    %18 = vector.broadcast %cst_6 : f32 to vector<1x4x1xf32>
    %19 = arith.select %16, %7, %18 : vector<1x4x1xi1>, vector<1x4x1xf32>
    %20 = vector.broadcast %17 : f32 to vector<1x4x1xf32>
    %21 = arith.mulf %20, %19 : vector<1x4x1xf32>
    %22 = arith.addf %6, %21 : vector<1x4x1xf32>
    %c0_i32_7 = arith.constant 0 : i32
    %23 = vector.broadcast %c0_i32_7 : i32 to vector<1x4x1xi32>
    %24 = arith.addi %5, %23 : vector<1x4x1xi32>
    %c0_i32_8 = arith.constant 0 : i32
    %25 = vector.broadcast %c0_i32_8 : i32 to vector<1x4x1xi32>
    %26 = arith.cmpi sge, %24, %25 : vector<1x4x1xi32>
    %c0_i32_9 = arith.constant 0 : i32
    %27 = vector.broadcast %c0_i32_9 : i32 to vector<1x4x1xi32>
    %28 = arith.addi %5, %27 : vector<1x4x1xi32>
    %c3_i32_10 = arith.constant 3 : i32
    %29 = vector.broadcast %c3_i32_10 : i32 to vector<1x4x1xi32>
    %30 = arith.cmpi sle, %28, %29 : vector<1x4x1xi32>
    %31 = arith.andi %26, %30 : vector<1x4x1xi1>
    %c1 = arith.constant 1 : index
    %32 = memref.load %arg1[%c1] : memref<3xf32, #tpu.memory_space<smem>>
    %cst_11 = arith.constant 0.000000e+00 : f32
    %33 = vector.broadcast %cst_11 : f32 to vector<1x4x1xf32>
    %34 = arith.select %31, %4, %33 : vector<1x4x1xi1>, vector<1x4x1xf32>
    %35 = vector.broadcast %32 : f32 to vector<1x4x1xf32>
    %36 = arith.mulf %35, %34 : vector<1x4x1xf32>
    %37 = arith.addf %22, %36 : vector<1x4x1xf32>
    %c3_i32_12 = arith.constant 3 : i32
    %38 = tpu.dynamic_rotate %4 by %c3_i32_12 dim 1 : vector<1x4x1xf32>, i32 -> vector<1x4x1xf32>
    %c1_i32_13 = arith.constant 1 : i32
    %39 = vector.broadcast %c1_i32_13 : i32 to vector<1x4x1xi32>
    %40 = arith.addi %5, %39 : vector<1x4x1xi32>
    %c0_i32_14 = arith.constant 0 : i32
    %41 = vector.broadcast %c0_i32_14 : i32 to vector<1x4x1xi32>
    %42 = arith.cmpi sge, %40, %41 : vector<1x4x1xi32>
    %c1_i32_15 = arith.constant 1 : i32
    %43 = vector.broadcast %c1_i32_15 : i32 to vector<1x4x1xi32>
    %44 = arith.addi %5, %43 : vector<1x4x1xi32>
    %c3_i32_16 = arith.constant 3 : i32
    %45 = vector.broadcast %c3_i32_16 : i32 to vector<1x4x1xi32>
    %46 = arith.cmpi sle, %44, %45 : vector<1x4x1xi32>
    %47 = arith.andi %42, %46 : vector<1x4x1xi1>
    %c2 = arith.constant 2 : index
    %48 = memref.load %arg1[%c2] : memref<3xf32, #tpu.memory_space<smem>>
    %cst_17 = arith.constant 0.000000e+00 : f32
    %49 = vector.broadcast %cst_17 : f32 to vector<1x4x1xf32>
    %50 = arith.select %47, %38, %49 : vector<1x4x1xi1>, vector<1x4x1xf32>
    %51 = vector.broadcast %48 : f32 to vector<1x4x1xf32>
    %52 = arith.mulf %51, %50 : vector<1x4x1xf32>
    %53 = arith.addf %37, %52 : vector<1x4x1xf32>
    %54 = arith.negf %53 : vector<1x4x1xf32>
    %55 = math.exp %54 : vector<1x4x1xf32>
    %cst_18 = arith.constant 1.000000e+00 : f32
    %56 = vector.broadcast %cst_18 : f32 to vector<1x4x1xf32>
    %57 = arith.addf %56, %55 : vector<1x4x1xf32>
    %58 = arith.divf %56, %57 : vector<1x4x1xf32>
    %59 = vector.broadcast %58 : vector<1x4x1xf32> to vector<1x4x256xf32>
    %60 = arith.mulf %0, %59 : vector<1x4x256xf32>
    %c0_19 = arith.constant 0 : index
    %c0_20 = arith.constant 0 : index
    %c0_21 = arith.constant 0 : index
    %61 = vector.load %arg3[%c0_19, %c0_20, %c0_21] : memref<1x4x256xf32, #tpu.memory_space<vmem>>, vector<1x4x256xf32>
    tpu.vector_store %arg3[%c0_19, %c0_20, %c0_21], %60 {strides = array<i32>} : memref<1x4x256xf32, #tpu.memory_space<vmem>>, vector<1x4x256xf32>,
    return
  }
  func.func @transform_0(%arg0: i32) -> i32 {
    %c0_i32 = arith.constant 0 : i32
    %c0_i32_0 = arith.constant 0 : i32
    return %c0_i32 : i32
  }
  func.func @transform_1(%arg0: i32) -> (i32, i32, i32) {
    %c0_i32 = arith.constant 0 : i32
    %c0_i32_0 = arith.constant 0 : i32
    %c0_i32_1 = arith.constant 0 : i32
    return %arg0, %c0_i32, %c0_i32_0 : i32, i32, i32
  }
  func.func @transform_2(%arg0: i32) -> (i32, i32, i32) {
    %c0_i32 = arith.constant 0 : i32
    %c0_i32_0 = arith.constant 0 : i32
    %c0_i32_1 = arith.constant 0 : i32
    return %arg0, %c0_i32, %c0_i32_0 : i32, i32, i32
  }
}

</mosaic_0001>

<llo_original>
// kernel: tpu_custom_call.1
$region0: #{tpu_custom_call.1}
  #allocation0 [shape = 'u32[]', space=smem, size = 0x4, offset = 0x4, fixed_abs, tag = 'smem constant byte address 0x4 - core index']
  #allocation1 [shape = 'u32[144,128]{1,0:T(1,128)}', space=vmem, size = 0x12000, scoped, tag = 'internal scratch']
  %s0 = inlined_call_operand.hbm [shape: f32[3], index: 0, kind: input, shape index: {}]
  %s1 = inlined_call_operand.hbm [shape: f32[2,4,256], index: 1, kind: input, shape index: {}]
  %s2 = inlined_call_operand.hbm [shape: f32[2,4,256], index: 2, kind: output, shape index: {}]
  %s3 = sld [smem:[#allocation0]]
  $region49: #{tpu_custom_call.1} parent=0
    _
  %s5 = ssub.s32 1, %s3
  %s6 = scalar_select 0, %s5, %s3
  $region1: #{tpu_custom_call.1} parent=0
    #allocation2 [shape = 'u8[512]{0}', space=smem, size = 0x200, scoped, tag = 'input window, operand 0, single buffered']
    #allocation3 [shape = 's32[2]{0}', space=sflag, size = 0x8, scoped, tag = 'scoped memory for tpu_custom_call.1']
    #allocation4 [shape = 's32[2]{0}', space=sflag, size = 0x8, scoped, tag = 'scoped memory for tpu_custom_call.1']
    #allocation5 [shape = 's32[2]{0}', space=sflag, size = 0x8, scoped, tag = 'scoped memory for tpu_custom_call.1']
    #allocation6 [shape = 'u8[8192]{0}', space=vmem, size = 0x2000, scoped, tag = 'input window, operand 1']
    #allocation7 [shape = 'u8[8192]{0}', space=vmem, size = 0x2000, scoped, tag = 'output window, operand 0']
    %7 = vsyncpa [#allocation5], 0
    %8 = vsyncpa [#allocation3], 0
    %s9 = scalar_lea.sflag [#allocation3], 1
    %10 = vsyncpa %s9, 0
    %11 = vsyncpa [#allocation4], 0
    %s12 = scalar_lea.sflag [#allocation4], 1
    %13 = vsyncpa %s12, 0
    loop: start=0, step=1, limit=4
    $region2: #{tpu_custom_call.1} parent=1 // loop_pre_header
      _
    $region3: #{tpu_custom_call.1} parent=1 // loop_header
      %s15 = sphi 0, %s19
      %p16 = scmp.ge.s32.totalorder %s15, 4
      %s23 = sphi 0, %s23
      %s25 = sphi 0, %s23
      %s26 = sphi 0, %s25
      %s40 = sphi 0, %s26
      %s46 = sphi 0, %s48
      %s49 = sphi 0, %s46
      %s50 = sphi 0, %s49
      %s66 = sphi 0, %s50
      %s72 = sphi 0, %s74
      %s75 = sphi 0, %s72
      %s76 = sphi 0, %s75
      %s92 = sphi 0, %s76
    $region4: #{tpu_custom_call.1} parent=1 // loop_header_branch
      %18 = sbr.rel (%p16) target = $region8
    $region5: #{tpu_custom_call.1} parent=1 // loop_body
      %s20 = ssub.s32 %s15, 1
      %s21 = ssub.s32 %s15, 2
      %s22 = sadd.s32 %s15, 1
      %s24 = sadd.s32 %s23, 1
      %p27 = scmp.eq.s32.totalorder %s15, 1
      %p28 = scmp.ne.s32.totalorder %s23, %s25
      %p29 = scmp.eq.s32.totalorder %s15, 0
      %p30 = por %p28, %p29
      %p31 = scmp.ne.s32.totalorder %s23, %s25
      %p32 = scmp.eq.s32.totalorder %s20, 1
      %p33 = por %p31, %p32
      %p34 = scmp.ne.s32.totalorder %s25, %s26
      %p35 = scmp.eq.s32.totalorder %s20, 0
      %p36 = por %p34, %p35
      %p37 = scmp.ne.s32.totalorder %s25, %s26
      %p38 = scmp.eq.s32.totalorder %s21, 1
      %p39 = por %p37, %p38
      %p41 = scmp.ne.s32.totalorder %s26, %s40
      %p42 = scmp.eq.s32.totalorder %s21, 0
      %p43 = por %p41, %p42
      %s44 = ssub.s32 %s15, %s22
      %p45 = scmp.eq.s32.totalorder %s44, 0
      %s47 = sadd.s32 %s46, 1
      %s48 = scalar_select %p45, %s46, %s47
      %p51 = pneg %p45
      %p52 = scmp.eq.s32.totalorder %s15, 1
      %p53 = por %p51, %p52
      %p54 = scmp.ne.s32.totalorder %s46, %s49
      %p55 = scmp.eq.s32.totalorder %s15, 0
      %p56 = por %p54, %p55
      %p57 = scmp.ne.s32.totalorder %s46, %s49
      %p58 = scmp.eq.s32.totalorder %s20, 1
      %p59 = por %p57, %p58
      %p60 = scmp.ne.s32.totalorder %s49, %s50
      %p61 = scmp.eq.s32.totalorder %s20, 0
      %p62 = por %p60, %p61
      %p63 = scmp.ne.s32.totalorder %s49, %s50
      %p64 = scmp.eq.s32.totalorder %s21, 1
      %p65 = por %p63, %p64
      %p67 = scmp.ne.s32.totalorder %s50, %s66
      %p68 = scmp.eq.s32.totalorder %s21, 0
      %p69 = por %p67, %p68
      %s70 = ssub.s32 %s15, %s22
      %p71 = scmp.eq.s32.totalorder %s70, 0
      %s73 = sadd.s32 %s72, 1
      %s74 = scalar_select %p71, %s72, %s73
      %p77 = pneg %p71
      %p78 = scmp.eq.s32.totalorder %s15, 1
      %p79 = por %p77, %p78
      %p80 = scmp.ne.s32.totalorder %s72, %s75
      %p81 = scmp.eq.s32.totalorder %s15, 0
      %p82 = por %p80, %p81
      %p83 = scmp.ne.s32.totalorder %s72, %s75
      %p84 = scmp.eq.s32.totalorder %s20, 1
      %p85 = por %p83, %p84
      %p86 = scmp.ne.s32.totalorder %s75, %s76
      %p87 = scmp.eq.s32.totalorder %s20, 0
      %p88 = por %p86, %p87
      %p89 = scmp.ne.s32.totalorder %s75, %s76
      %p90 = scmp.eq.s32.totalorder %s21, 1
      %p91 = por %p89, %p90
      %p93 = scmp.ne.s32.totalorder %s76, %s92
      %p94 = scmp.eq.s32.totalorder %s21, 0
      %p95 = por %p93, %p94
      %p96 = scmp.le.s32.totalorder 1, %s15
      %p97 = scmp.lt.s32.totalorder %s15, 3
      %p98 = pnand %p96, %p97
      %p99 = pneg %p98
      // Predicated region
      $region9: #{tpu_custom_call.1} parent=5 // pred_check
        _
      $region10: #{tpu_custom_call.1} parent=5 // pred_check_branch
        %101 = sbr.rel (%p98) target = $region12
      $region11: #{tpu_custom_call.1} parent=5 // pred_region
        %s102 = ssub.s32 %s15, 1
        // Predicated region
        $region13: #{tpu_custom_call.1} parent=11 // pred_check
          %p103 = pneg %p36
        $region14: #{tpu_custom_call.1} parent=11 // pred_check_branch
          %105 = sbr.rel (%p103) target = $region16
        $region15: #{tpu_custom_call.1} parent=11 // pred_region
          %s107 = ssub.s32 16, 16
          %108 = vsyncadd [#allocation5], %s107
          %111 = dma.hbm_to_smem %s0, 16, [#allocation2], [#allocation5]
        $region16: #{tpu_custom_call.1} parent=11 // pred_fallthru
          _
      $region12: #{tpu_custom_call.1} parent=5 // pred_fallthru
        _
      %p112 = scmp.lt.s32.totalorder %s15, 2
      // Predicated region
      $region17: #{tpu_custom_call.1} parent=5 // pred_check
        %p113 = pneg %p112
      $region18: #{tpu_custom_call.1} parent=5 // pred_check_branch
        %115 = sbr.rel (%p113) target = $region20
      $region19: #{tpu_custom_call.1} parent=5 // pred_region
        // Predicated region
        $region21: #{tpu_custom_call.1} parent=19 // pred_check
          %p116 = pneg %p56
        $region22: #{tpu_custom_call.1} parent=19 // pred_check_branch
          %118 = sbr.rel (%p116) target = $region24
        $region23: #{tpu_custom_call.1} parent=19 // pred_region
          %s119 = sand.u32 %s46, 1
          %s120 = scalar_lea.sflag [#allocation3], %s119
          %s121 = sand.u32 %s46, 1
          %s122 = smul.addr %s121, 8
          %s123 = scalar_lea.vmem [#allocation6], %s122
          %s125 = ssub.s32 128, 128
          %126 = vsyncadd %s120, %s125
          %s127 = smul.addr %s15, 2
          %s128 = smul.addr %s127, 64
          %s129 = scalar_lea.hbm %s1, %s128
          %s131 = sshll.u32 %s123, 4
          %s132 = int_to_ptr.vmem [resolvable:$true] %s131
          %134 = dma.hbm_to_vmem [thread:$0]  %s129, 128, %s132, %s120
        $region24: #{tpu_custom_call.1} parent=19 // pred_fallthru
          _
      $region20: #{tpu_custom_call.1} parent=5 // pred_fallthru
        _
      %p135 = scmp.le.s32.totalorder 1, %s15
      %p136 = scmp.lt.s32.totalorder %s15, 3
      %p137 = pnand %p135, %p136
      %p138 = pneg %p137
      // Predicated region
      $region25: #{tpu_custom_call.1} parent=5 // pred_check
        _
      $region26: #{tpu_custom_call.1} parent=5 // pred_check_branch
        %140 = sbr.rel (%p137) target = $region28
      $region27: #{tpu_custom_call.1} parent=5 // pred_region
        %s141 = ssub.s32 %s15, 1
        // Predicated region
        $region29: #{tpu_custom_call.1} parent=27 // pred_check
          %p142 = pneg %p36
        $region30: #{tpu_custom_call.1} parent=27 // pred_check_branch
          %144 = sbr.rel (%p142) target = $region32
        $region31: #{tpu_custom_call.1} parent=27 // pred_region
          %145 = dma.done [#allocation5], 16
        $region32: #{tpu_custom_call.1} parent=27 // pred_fallthru
          _
        %s146 = sand.u32 %s49, 1
        %s147 = scalar_lea.sflag [#allocation3], %s146
        %s148 = sand.u32 %s49, 1
        %s149 = smul.addr %s148, 8
        %s150 = scalar_lea.vmem [#allocation6], %s149
        // Predicated region
        $region33: #{tpu_custom_call.1} parent=27 // pred_check
          %p151 = pneg %p62
        $region34: #{tpu_custom_call.1} parent=27 // pred_check_branch
          %153 = sbr.rel (%p151) target = $region36
        $region35: #{tpu_custom_call.1} parent=27 // pred_region
          %154 = dma.done %s147, 128
        $region36: #{tpu_custom_call.1} parent=27 // pred_fallthru
          _
        %155 = sfence
        %p156 = pneg %p36
        %p157 = pneg %p33
        %s158 = sand.u32 %s49, 1
        %s159 = scalar_lea.sflag [#allocation3], %s158
        %s160 = sand.u32 %s49, 1
        %s161 = smul.addr %s160, 8
        %s162 = scalar_lea.vmem [#allocation6], %s161
        %p163 = pneg %p62
        %p164 = pneg %p59
        %p165 = pneg %p88
        %p166 = pneg %p85
        %s167 = sand.u32 %s75, 1
        %s168 = scalar_lea.sflag [#allocation4], %s167
        %s169 = sand.u32 %s75, 1
        %s170 = smul.addr %s169, 8
        %s171 = scalar_lea.vmem [#allocation7], %s170
        %v172 = vld [vmem:[%s150] sm:$0xff]
        %v174 = vcombine.high %v172, %v172
        %vm176 = vcmask 1043456
        %v177 = vsel %vm176, %v172, 0.0
        %v178 = vsel %vm176, %v174, 0.0
        %v179 = vadd.f32 %v177, %v178
        %180 = vadd.xlane.f32.xlu0 %v179
        %v181 = vpop.xlane.xlu0 %180
        %v182 = vmul.f32 %v181, 0.00390625
        %v183 = vlaneseq
        %v184 = vshrl.u32 %v183, 7
        %vm185 = vcmask 1047556
        %v186 = vrot.slane %v182, 4
        %v187 = vsel %vm185, %v186, %v182
        %v188 = vrot.slane %v187, 4
        %v189 = vsel %vm185, %v188, %v182
        %v190 = vadd.s32 %v184, 4294967295
        %vm191 = vcmp.ge.s32.totalorder %v190, 0
        %vm192 = vcmp.le.s32.totalorder %v190, 3
        %vm193 = vmand %vm191, %vm192
        %s194 = sld [smem:[#allocation2]]
        %v196 = vrot.slane %v189, 3
        %v198 = vsel %vm193, %v196, 0.0
        %v199 = vstv %s194
        %v200 = vmul.f32 %v199, %v198
        %v201 = vadd.f32 %v200, 0.0
        %vm202 = vcmp.ge.s32.totalorder %v184, 0
        %vm203 = vcmp.le.s32.totalorder %v184, 3
        %vm204 = vmand %vm202, %vm203
        %s205 = sld [smem:[#allocation2 + $0x1]]
        %v206 = vsel %vm204, %v182, 0.0
        %v207 = vstv %s205
        %v208 = vmul.f32 %v207, %v206
        %v209 = vadd.f32 %v201, %v208
        %v210 = vadd.s32 %v184, 1
        %vm211 = vcmp.ge.s32.totalorder %v210, 0
        %vm212 = vcmp.le.s32.totalorder %v210, 3
        %vm213 = vmand %vm211, %vm212
        %s214 = sld [smem:[#allocation2 + $0x2]]
        %v215 = vrot.slane %v189, 1
        %v217 = vsel %vm213, %v215, 0.0
        %v218 = vstv %s214
        %v219 = vmul.f32 %v218, %v217
        %v220 = vadd.f32 %v209, %v219
        %v221 = vxor.u32 %v220, 2147483648
        %v222 = vmul.f32 %v221, 1.442695
        %v223 = vpow.pop %v222
        %v224 = vadd.f32 %v223, 1.0
        %v225 = vrcp.pop %v224
        %v226 = vmul.f32 1.0, %v225
        %228 = vset.pattern.permute.xlu0 0
        %229 = vperm.xlu0 %228, %v226
        %v230 = vpop.permute.xlu0 %229
        %v232 = vunpack.c.l.s4 839922192
        %v233 = vunpack.c.0.s8 %v232
        %v234 = vlaneseq
        %v235 = vshrl.u32 %v234, 7
        %v236 = vsub.s32 %v233, %v235
        %v237 = vrot.slane %v230, %v236
        %v239 = vmul.f32 %v172, %v237
        %240 = vst [vmem:[%s171] sm:$0xff] %v239
        %s241 = sand.u32 %s75, 1
        %s242 = scalar_lea.sflag [#allocation4], %s241
        %s243 = sand.u32 %s75, 1
        %s244 = smul.addr %s243, 8
        %s245 = scalar_lea.vmem [#allocation7], %s244
        // Predicated region
        $region37: #{tpu_custom_call.1} parent=27 // pred_check
          %p246 = pneg %p85
        $region38: #{tpu_custom_call.1} parent=27 // pred_check_branch
          %248 = sbr.rel (%p246) target = $region40
        $region39: #{tpu_custom_call.1} parent=27 // pred_region
          %s250 = ssub.s32 128, 128
          %251 = vsyncadd %s242, %s250
          %s252 = smul.addr %s20, 2
          %s253 = smul.addr %s252, 64
          %s254 = scalar_lea.hbm %s2, %s253
          %s256 = sshll.u32 %s245, 4
          %s257 = int_to_ptr.vmem [resolvable:$true] %s256
          %259 = dma.vmem_to_hbm [thread:$0]  %s257, 128, %s254, %s242
        $region40: #{tpu_custom_call.1} parent=27 // pred_fallthru
          _
      $region28: #{tpu_custom_call.1} parent=5 // pred_fallthru
        _
      %p260 = scmp.le.s32.totalorder 2, %s15
      // Predicated region
      $region41: #{tpu_custom_call.1} parent=5 // pred_check
        %p261 = pneg %p260
      $region42: #{tpu_custom_call.1} parent=5 // pred_check_branch
        %263 = sbr.rel (%p261) target = $region44
      $region43: #{tpu_custom_call.1} parent=5 // pred_region
        %s264 = ssub.s32 %s15, 2
        // Predicated region
        $region45: #{tpu_custom_call.1} parent=43 // pred_check
          %p265 = pneg %p91
        $region46: #{tpu_custom_call.1} parent=43 // pred_check_branch
          %267 = sbr.rel (%p265) target = $region48
        $region47: #{tpu_custom_call.1} parent=43 // pred_region
          %s268 = sand.u32 %s76, 1
          %s269 = scalar_lea.sflag [#allocation4], %s268
          %s270 = sand.u32 %s76, 1
          %s271 = smul.addr %s270, 8
          %s272 = scalar_lea.vmem [#allocation7], %s271
          %273 = dma.done %s269, 128
        $region48: #{tpu_custom_call.1} parent=43 // pred_fallthru
          _
      $region44: #{tpu_custom_call.1} parent=5 // pred_fallthru
        _
    $region6: #{tpu_custom_call.1} parent=1 // loop_footer
      %s19 = sadd.s32 1, %s15
    $region7: #{tpu_custom_call.1} parent=1 // loop_footer_branch
      %14 = sbr.rel target = $region3
    $region8: #{tpu_custom_call.1} parent=1 // loop_exit
      _
    %274 = vsyncpa [#allocation3], 1
    %s275 = scalar_lea.sflag [#allocation3], 1
    %276 = vsyncpa %s275, 1
    %277 = vsyncpa [#allocation4], 1
    %s278 = scalar_lea.sflag [#allocation4], 1
    %279 = vsyncpa %s278, 1
    %280 = vsyncpa [#allocation5], 1
    %s281 = scalar_lea.sflag [#allocation5], 1
    %282 = vsyncpa %s281, 1

</llo_original>
